<compile_context>
chip_gen: v6e
topology: v6e:2x2x1
jax: 0.10.0
libtpu: 0.0.40
codegen_flags: <defaults>
</compile_context>

<pallas_src>
import functools

import jax
import jax.numpy as jnp
from jax.experimental import pallas as pl
from jax.experimental.pallas import tpu as pltpu

_NPAD = 128  # lane-dense width for the final (N=1) layer's MXU operand


def _round_up(a, m):
    return ((a + m - 1) // m) * m


def _discriminator_kernel(x_ref, w1_ref, b1_ref, w2_ref, b2_ref, w3_ref, b3_ref, o_ref):
    # x_ref: (TM, latent) f32 ; weights bf16 ; biases f32 ; o_ref: (TM, 1) f32
    x = x_ref[...].astype(w1_ref.dtype)                                # f32 -> bf16 in-kernel (VPU)

    h1 = jnp.dot(x, w1_ref[...], preferred_element_type=jnp.float32) + b1_ref[...]
    h1 = jnp.where(h1 > 0, h1, 0.2 * h1).astype(w2_ref.dtype)         # LeakyReLU fused with downcast

    h2 = jnp.dot(h1, w2_ref[...], preferred_element_type=jnp.float32) + b2_ref[...]
    h2 = jnp.where(h2 > 0, h2, 0.2 * h2).astype(w3_ref.dtype)         # LeakyReLU fused with downcast

    h3 = jnp.dot(h2, w3_ref[...], preferred_element_type=jnp.float32)  # (TM, 128), lane-padded MXU pass
    o_ref[...] = jax.nn.sigmoid(h3[:, :1] + b3_ref[:, :1])             # narrow (TM, 1) store


def discriminator_forward(x, params, *, tile_m=2048, compute_dtype=jnp.bfloat16):
    """x: [B, latent_dim] float32. params: transposed weights [in,out], biases [1,out]."""
    B, latent = x.shape
    H1 = params["w1"].shape[1]
    H2 = params["w2"].shape[1]

    # MXU operands bf16; biases stay f32 (added to f32 accumulators).
    w1 = params["w1"].astype(compute_dtype)
    w2 = params["w2"].astype(compute_dtype)
    b1 = params["b1"].astype(jnp.float32)
    b2 = params["b2"].astype(jnp.float32)
    # Lane-pad the final layer's weight/bias from N=1 to N=128 (MXU operand only).
    w3 = jnp.pad(params["w3"], ((0, 0), (0, _NPAD - params["w3"].shape[1]))).astype(compute_dtype)
    b3 = jnp.pad(params["b3"], ((0, 0), (0, _NPAD - params["b3"].shape[1]))).astype(jnp.float32)

    # Batch tile: multiple of 8 (sublane), capped by tile_m, and capped so the
    # grid has >=2 steps whenever B allows it (v7x megacore sharding).
    tm = max(8, min(tile_m, _round_up(pl.cdiv(B, 2), 8)))
    Bp = _round_up(B, tm)
    xp = x if Bp == B else jnp.pad(x, ((0, Bp - B), (0, 0)))           # f32 — no wrapper downcast

    grid = (Bp // tm,)
    in_specs = [
        pl.BlockSpec((tm, latent), lambda i: (i, 0)),     # x tile, pipelined
        pl.BlockSpec((latent, H1), lambda i: (0, 0)),     # weights/biases: VMEM-resident
        pl.BlockSpec((1, H1), lambda i: (0, 0)),
        pl.BlockSpec((H1, H2), lambda i: (0, 0)),
        pl.BlockSpec((1, H2), lambda i: (0, 0)),
        pl.BlockSpec((H2, _NPAD), lambda i: (0, 0)),
        pl.BlockSpec((1, _NPAD), lambda i: (0, 0)),
    ]
    out_specs = pl.BlockSpec((tm, 1), lambda i: (i, 0))   # narrow output, no padded slab
    out_shape = jax.ShapeDtypeStruct((Bp, 1), jnp.float32)

    weight_bytes = sum(a.size * a.dtype.itemsize for a in (w1, b1, w2, b2, w3, b3))
    cost = pl.CostEstimate(
        flops=2 * Bp * (latent * H1 + H1 * H2 + H2 * _NPAD),
        transcendentals=Bp,
        bytes_accessed=xp.size * xp.dtype.itemsize + Bp * 4 + weight_bytes,
    )

    out = pl.pallas_call(
        _discriminator_kernel,
        out_shape=out_shape,
        grid=grid,
        in_specs=in_specs,
        out_specs=out_specs,
        compiler_params=pltpu.CompilerParams(
            dimension_semantics=("parallel",),
            vmem_limit_bytes=48 * 1024 * 1024,
        ),
        cost_estimate=cost,
    )(xp, w1, b1, w2, b2, w3, b3)

    return out if Bp == B else out[:B]


def init_params(key, latent_dim=10):
    """Deterministic PyTorch-style init: U(-1/sqrt(fan_in), 1/sqrt(fan_in)).
    Weights stored transposed as [in, out]; biases as [1, out]."""
    dims = [(latent_dim, 512), (512, 256), (256, 1)]
    params = {}
    for i, (fan_in, fan_out) in enumerate(dims, start=1):
        key, kw, kb = jax.random.split(key, 3)
        bound = 1.0 / (fan_in ** 0.5)
        params[f"w{i}"] = jax.random.uniform(
            kw, (fan_in, fan_out), jnp.float32, -bound, bound)
        params[f"b{i}"] = jax.random.uniform(
            kb, (1, fan_out), jnp.float32, -bound, bound)
    return params


def _reference(x, p, compute_dtype=jnp.bfloat16):
    """Mirrors the kernel's numerics: bf16 matmul operands, f32 accumulation."""
    cd = compute_dtype
    h = jnp.dot(x.astype(cd), p["w1"].astype(cd), preferred_element_type=jnp.float32) + p["b1"]
    h = jnp.where(h > 0, h, 0.2 * h)
    h = jnp.dot(h.astype(cd), p["w2"].astype(cd), preferred_element_type=jnp.float32) + p["b2"]
    h = jnp.where(h > 0, h, 0.2 * h)
    h = jnp.dot(h.astype(cd), p["w3"].astype(cd), preferred_element_type=jnp.float32) + p["b3"]
    return jax.nn.sigmoid(h)


if __name__ == "__main__":
    latent_dim = 10
    batch = 8

    key = jax.random.PRNGKey(0)
    key, kx = jax.random.split(key)
    x = jax.random.normal(kx, (batch, latent_dim), jnp.float32)
    params = init_params(key, latent_dim)

    fwd = jax.jit(functools.partial(discriminator_forward))
    out = jax.block_until_ready(fwd(x, params))

    ref = _reference(x, params)
    assert out.shape == (batch, 1), out.shape
    assert jnp.allclose(out, ref, atol=2e-3, rtol=2e-3), (out, ref)

    print("KERNEL_OK")
</pallas_src>

<mosaic_0001>
module attributes {stable_mosaic.version = 11 : i64} {
  func.func @_discriminator_kernel(%arg0: i32, %arg1: memref<8x10xf32, #tpu.memory_space<vmem>>, %arg2: memref<10x512xbf16, #tpu.memory_space<vmem>>, %arg3: memref<1x512xf32, #tpu.memory_space<vmem>>, %arg4: memref<512x256xbf16, #tpu.memory_space<vmem>>, %arg5: memref<1x256xf32, #tpu.memory_space<vmem>>, %arg6: memref<256x128xbf16, #tpu.memory_space<vmem>>, %arg7: memref<1x128xf32, #tpu.memory_space<vmem>>, %arg8: memref<8x1xf32, #tpu.memory_space<vmem>>) attributes {dimension_semantics = [#tpu.dimension_semantics<parallel>], iteration_bounds = array<i64: 1>, scalar_prefetch = 0 : i64, scratch_operands = 0 : i64, tpu.core_type = #tpu.core_type<tc>, window_params = [{transform_indices = @transform_0, window_bounds = array<i64: 8, 10>}, {pipeline_mode = #tpu.pipeline_mode<synchronous>, transform_indices = @transform_1, window_bounds = array<i64: 10, 512>}, {pipeline_mode = #tpu.pipeline_mode<synchronous>, transform_indices = @transform_2, window_bounds = array<i64: 1, 512>}, {pipeline_mode = #tpu.pipeline_mode<synchronous>, transform_indices = @transform_3, window_bounds = array<i64: 512, 256>}, {pipeline_mode = #tpu.pipeline_mode<synchronous>, transform_indices = @transform_4, window_bounds = array<i64: 1, 256>}, {pipeline_mode = #tpu.pipeline_mode<synchronous>, transform_indices = @transform_5, window_bounds = array<i64: 256, 128>}, {pipeline_mode = #tpu.pipeline_mode<synchronous>, transform_indices = @transform_6, window_bounds = array<i64: 1, 128>}, {transform_indices = @transform_7, window_bounds = array<i64: 8, 1>}]} {
    %c0 = arith.constant 0 : index
    %c0_0 = arith.constant 0 : index
    %0 = vector.load %arg1[%c0, %c0_0] : memref<8x10xf32, #tpu.memory_space<vmem>>, vector<8x10xf32>
    %1 = arith.truncf %0 : vector<8x10xf32> to vector<8x10xbf16>
    %c0_1 = arith.constant 0 : index
    %c0_2 = arith.constant 0 : index
    %2 = vector.load %arg2[%c0_1, %c0_2] : memref<10x512xbf16, #tpu.memory_space<vmem>>, vector<10x512xbf16>
    %cst = arith.constant dense<0.000000e+00> : vector<8x512xf32>
    %3 = tpu.matmul %1, %2, %cst {dimension_numbers = #tpu.dot_dimension_numbers<[1], [0], [0], [1], [0, 0, 1, 1], [], []>} : vector<8x10xbf16>, vector<10x512xbf16>, vector<8x512xf32> -> vector<8x512xf32>
    %c0_3 = arith.constant 0 : index
    %c0_4 = arith.constant 0 : index
    %4 = vector.load %arg3[%c0_3, %c0_4] : memref<1x512xf32, #tpu.memory_space<vmem>>, vector<1x512xf32>
    %5 = vector.broadcast %4 : vector<1x512xf32> to vector<8x512xf32>
    %6 = arith.addf %3, %5 : vector<8x512xf32>
    %cst_5 = arith.constant 0.000000e+00 : f32
    %7 = vector.broadcast %cst_5 : f32 to vector<8x512xf32>
    %8 = arith.cmpf ogt, %6, %7 : vector<8x512xf32>
    %cst_6 = arith.constant 2.000000e-01 : f32
    %9 = vector.broadcast %cst_6 : f32 to vector<8x512xf32>
    %10 = arith.mulf %9, %6 : vector<8x512xf32>
    %11 = arith.select %8, %6, %10 : vector<8x512xi1>, vector<8x512xf32>
    %12 = arith.truncf %11 : vector<8x512xf32> to vector<8x512xbf16>
    %c0_7 = arith.constant 0 : index
    %c0_8 = arith.constant 0 : index
    %13 = vector.load %arg4[%c0_7, %c0_8] : memref<512x256xbf16, #tpu.memory_space<vmem>>, vector<512x256xbf16>
    %cst_9 = arith.constant dense<0.000000e+00> : vector<8x256xf32>
    %14 = tpu.matmul %12, %13, %cst_9 {dimension_numbers = #tpu.dot_dimension_numbers<[1], [0], [0], [1], [0, 0, 1, 1], [], []>} : vector<8x512xbf16>, vector<512x256xbf16>, vector<8x256xf32> -> vector<8x256xf32>
    %c0_10 = arith.constant 0 : index
    %c0_11 = arith.constant 0 : index
    %15 = vector.load %arg5[%c0_10, %c0_11] : memref<1x256xf32, #tpu.memory_space<vmem>>, vector<1x256xf32>
    %16 = vector.broadcast %15 : vector<1x256xf32> to vector<8x256xf32>
    %17 = arith.addf %14, %16 : vector<8x256xf32>
    %cst_12 = arith.constant 0.000000e+00 : f32
    %18 = vector.broadcast %cst_12 : f32 to vector<8x256xf32>
    %19 = arith.cmpf ogt, %17, %18 : vector<8x256xf32>
    %cst_13 = arith.constant 2.000000e-01 : f32
    %20 = vector.broadcast %cst_13 : f32 to vector<8x256xf32>
    %21 = arith.mulf %20, %17 : vector<8x256xf32>
    %22 = arith.select %19, %17, %21 : vector<8x256xi1>, vector<8x256xf32>
    %23 = arith.truncf %22 : vector<8x256xf32> to vector<8x256xbf16>
    %c0_14 = arith.constant 0 : index
    %c0_15 = arith.constant 0 : index
    %24 = vector.load %arg6[%c0_14, %c0_15] : memref<256x128xbf16, #tpu.memory_space<vmem>>, vector<256x128xbf16>
    %cst_16 = arith.constant dense<0.000000e+00> : vector<8x128xf32>
    %25 = tpu.matmul %23, %24, %cst_16 {dimension_numbers = #tpu.dot_dimension_numbers<[1], [0], [0], [1], [0, 0, 1, 1], [], []>} : vector<8x256xbf16>, vector<256x128xbf16>, vector<8x128xf32> -> vector<8x128xf32>
    %26 = vector.extract_strided_slice %25 {offsets = [0, 0], sizes = [8, 1], strides = [1, 1]} : vector<8x128xf32> to vector<8x1xf32>
    %c0_17 = arith.constant 0 : index
    %c0_18 = arith.constant 0 : index
    %27 = vector.load %arg7[%c0_17, %c0_18] : memref<1x128xf32, #tpu.memory_space<vmem>>, vector<1x1xf32>
    %28 = vector.broadcast %27 : vector<1x1xf32> to vector<8x1xf32>
    %29 = arith.addf %26, %28 : vector<8x1xf32>
    %30 = arith.negf %29 : vector<8x1xf32>
    %31 = math.exp %30 : vector<8x1xf32>
    %cst_19 = arith.constant 1.000000e+00 : f32
    %32 = vector.broadcast %cst_19 : f32 to vector<8x1xf32>
    %33 = arith.addf %32, %31 : vector<8x1xf32>
    %34 = arith.divf %32, %33 : vector<8x1xf32>
    %c0_20 = arith.constant 0 : index
    %c0_21 = arith.constant 0 : index
    %35 = vector.load %arg8[%c0_20, %c0_21] : memref<8x1xf32, #tpu.memory_space<vmem>>, vector<8x1xf32>
    tpu.vector_store %arg8[%c0_20, %c0_21], %34 {strides = array<i32>} : memref<8x1xf32, #tpu.memory_space<vmem>>, vector<8x1xf32>,
    return
  }
  func.func @transform_0(%arg0: i32) -> (i32, i32) {
    %c0_i32 = arith.constant 0 : i32
    %c0_i32_0 = arith.constant 0 : i32
    return %arg0, %c0_i32 : i32, i32
  }
  func.func @transform_1(%arg0: i32) -> (i32, i32) {
    %c0_i32 = arith.constant 0 : i32
    %c0_i32_0 = arith.constant 0 : i32
    %c0_i32_1 = arith.constant 0 : i32
    return %c0_i32, %c0_i32_0 : i32, i32
  }
  func.func @transform_2(%arg0: i32) -> (i32, i32) {
    %c0_i32 = arith.constant 0 : i32
    %c0_i32_0 = arith.constant 0 : i32
    %c0_i32_1 = arith.constant 0 : i32
    return %c0_i32, %c0_i32_0 : i32, i32
  }
  func.func @transform_3(%arg0: i32) -> (i32, i32) {
    %c0_i32 = arith.constant 0 : i32
    %c0_i32_0 = arith.constant 0 : i32
    %c0_i32_1 = arith.constant 0 : i32
    return %c0_i32, %c0_i32_0 : i32, i32
  }
  func.func @transform_4(%arg0: i32) -> (i32, i32) {
    %c0_i32 = arith.constant 0 : i32
    %c0_i32_0 = arith.constant 0 : i32
    %c0_i32_1 = arith.constant 0 : i32
    return %c0_i32, %c0_i32_0 : i32, i32
  }
  func.func @transform_5(%arg0: i32) -> (i32, i32) {
    %c0_i32 = arith.constant 0 : i32
    %c0_i32_0 = arith.constant 0 : i32
    %c0_i32_1 = arith.constant 0 : i32
    return %c0_i32, %c0_i32_0 : i32, i32
  }
  func.func @transform_6(%arg0: i32) -> (i32, i32) {
    %c0_i32 = arith.constant 0 : i32
    %c0_i32_0 = arith.constant 0 : i32
    %c0_i32_1 = arith.constant 0 : i32
    return %c0_i32, %c0_i32_0 : i32, i32
  }
  func.func @transform_7(%arg0: i32) -> (i32, i32) {
    %c0_i32 = arith.constant 0 : i32
    %c0_i32_0 = arith.constant 0 : i32
    return %arg0, %c0_i32 : i32, i32
  }
}

</mosaic_0001>

<llo_original>
// kernel: discriminator_forward.1
$region0: #{discriminator_forward.1}
  #allocation0 [shape = 'u32[]', space=smem, size = 0x4, offset = 0x4, fixed_abs, tag = 'smem constant byte address 0x4 - core index']
  #allocation1 [shape = 'u32[144,128]{1,0:T(1,128)}', space=vmem, size = 0x12000, scoped, tag = 'internal scratch']
  %s0 = inlined_call_operand.vmem [shape: f32[8,10], index: 0, kind: input, shape index: {}]
  %s1 = inlined_call_operand.vmem [shape: bf16[10,512], index: 1, kind: input, shape index: {}]
  %s2 = inlined_call_operand.vmem [shape: f32[1,512], index: 2, kind: input, shape index: {}]
  %s3 = inlined_call_operand.vmem [shape: bf16[512,256], index: 3, kind: input, shape index: {}]
  %s4 = inlined_call_operand.vmem [shape: f32[1,256], index: 4, kind: input, shape index: {}]
  %s5 = inlined_call_operand.vmem [shape: bf16[256,128], index: 5, kind: input, shape index: {}]
  %s6 = inlined_call_operand.vmem [shape: f32[1,128], index: 6, kind: input, shape index: {}]
  %s7 = inlined_call_operand.vmem [shape: f32[8,1], index: 7, kind: output, shape index: {}]
  %s8 = sld [smem:[#allocation0]]
  $region38: #{discriminator_forward.1} parent=0
    _
  %s10 = ssub.s32 1, %s8
  %s11 = scalar_select 0, %s10, %s8
  // Predicated region
  $region2: #{discriminator_forward.1} parent=0 // pred_check
    _
  $region3: #{discriminator_forward.1} parent=0 // pred_check_branch
    %13 = sbr.rel (0) target = $region5
  $region4: #{discriminator_forward.1} parent=0 // pred_region
    _
  $region5: #{discriminator_forward.1} parent=0 // pred_fallthru
    _
  // Predicated region
  $region6: #{discriminator_forward.1} parent=0 // pred_check
    _
  $region7: #{discriminator_forward.1} parent=0 // pred_check_branch
    %15 = sbr.rel (0) target = $region9
  $region8: #{discriminator_forward.1} parent=0 // pred_region
    _
  $region9: #{discriminator_forward.1} parent=0 // pred_fallthru
    _
  // Predicated region
  $region10: #{discriminator_forward.1} parent=0 // pred_check
    _
  $region11: #{discriminator_forward.1} parent=0 // pred_check_branch
    %17 = sbr.rel (0) target = $region13
  $region12: #{discriminator_forward.1} parent=0 // pred_region
    _
  $region13: #{discriminator_forward.1} parent=0 // pred_fallthru
    _
  // Predicated region
  $region14: #{discriminator_forward.1} parent=0 // pred_check
    _
  $region15: #{discriminator_forward.1} parent=0 // pred_check_branch
    %19 = sbr.rel (0) target = $region17
  $region16: #{discriminator_forward.1} parent=0 // pred_region
    _
  $region17: #{discriminator_forward.1} parent=0 // pred_fallthru
    _
  // Predicated region
  $region18: #{discriminator_forward.1} parent=0 // pred_check
    _
  $region19: #{discriminator_forward.1} parent=0 // pred_check_branch
    %21 = sbr.rel (0) target = $region21
  $region20: #{discriminator_forward.1} parent=0 // pred_region
    _
  $region21: #{discriminator_forward.1} parent=0 // pred_fallthru
    _
  // Predicated region
  $region22: #{discriminator_forward.1} parent=0 // pred_check
    _
  $region23: #{discriminator_forward.1} parent=0 // pred_check_branch
    %23 = sbr.rel (0) target = $region25
  $region24: #{discriminator_forward.1} parent=0 // pred_region
    _
  $region25: #{discriminator_forward.1} parent=0 // pred_fallthru
    _
  // Predicated region
  $region26: #{discriminator_forward.1} parent=0 // pred_check
    _
  $region27: #{discriminator_forward.1} parent=0 // pred_check_branch
    %25 = sbr.rel (0) target = $region29
  $region28: #{discriminator_forward.1} parent=0 // pred_region
    _
  $region29: #{discriminator_forward.1} parent=0 // pred_fallthru
    _
  %v27 = vld [vmem:[%s0] sm:$0xff]
  %v28 = vpack.c.bf16 %v27, %v27
  %v29 = vld [vmem:[%s1] sm:$0xff]
  %v30 = vld [vmem:[%s1 + $0x8] sm:$0xff]
  %v31 = vld [vmem:[%s1 + $0x10] sm:$0x11]
  %v32 = vld [vmem:[%s1 + $0x18] sm:$0x11]
  %v33 = vld [vmem:[%s2] sm:$0xf]
  %v35 = vlaneseq
  %v36 = vshrl.u32 %v35, 7
  %v37 = vsub.s32 0, %v36
  %v38 = vrot.slane %v33, %v37
  %v39 = vlaneseq
  %v40 = vshrl.u32 %v39, 7
  %v41 = vsub.s32 1, %v40
  %v42 = vrot.slane %v33, %v41
  %v43 = vlaneseq
  %v44 = vshrl.u32 %v43, 7
  %v45 = vsub.s32 2, %v44
  %v46 = vrot.slane %v33, %v45
  %v47 = vlaneseq
  %v48 = vshrl.u32 %v47, 7
  %v49 = vsub.s32 3, %v48
  %v50 = vrot.slane %v33, %v49
  %v59 = vunpack.c.l.b16 %v29
  %v60 = vunpack.c.h.b16 %v29
  %v61 = vunpack.c.l.b16 %v30
  %v62 = vunpack.c.h.b16 %v30
  %v63 = vunpack.c.l.b16 %v31
  %v64 = vunpack.c.h.b16 %v31
  %v65 = vunpack.c.l.b16 %v32
  %v66 = vunpack.c.h.b16 %v32
  %v67 = vpack.c.b16 %v63, %v59
  %v68 = vpack.c.b16 %v64, %v60
  %v69 = vpack.c.b16 %v65, %v61
  %v70 = vpack.c.b16 %v66, %v62
  %vm71 = vcmask 80896
  %v73 = vsel %vm71, %v28, 0
  %vm75 = vcmask 1044480
  %v77 = vsel %vm75, %v67, 0
  %v80 = vsel %vm75, %v68, 0
  %v83 = vsel %vm75, %v69, 0
  %v86 = vsel %vm75, %v70, 0
  %88 = vmatprep.subr.bf16.mxu0 0
  %89 = vmatpush1.bf16.msra.mxu0 0
  %90 = vmatprep.subr.bf16.mxu0 0
  %91 = vmatpush1.bf16.msra.mxu0 0
  %92 = vmatprep.subr.bf16.mxu0 0
  %93 = vmatpush1.bf16.msra.mxu0 0
  %94 = vmatprep.subr.bf16.mxu0 0
  %95 = vmatpush1.bf16.msra.mxu0 0
  %96 = vmatprep.subr.bf16.mxu0 0
  %97 = vmatpush1.bf16.msra.mxu0 0
  %98 = vmatprep.subr.bf16.mxu0 0
  %99 = vmatpush1.bf16.msra.mxu0 0
  %100 = vmatprep.subr.bf16.mxu0 0
  %101 = vmatpush1.bf16.msra.mxu0 0
  %102 = vmatprep.subr.bf16.mxu0 %v80
  %103 = vmatpush1.bf16.msra.mxu0 %v77
  %104 = vmatprep.subr.bf16.mxu0 0
  %105 = vmatpush2.bf16.msra.mxu0 0
  %106 = vmatprep.subr.bf16.mxu0 0
  %107 = vmatpush2.bf16.msra.mxu0 0
  %108 = vmatprep.subr.bf16.mxu0 0
  %109 = vmatpush2.bf16.msra.mxu0 0
  %110 = vmatprep.subr.bf16.mxu0 0
  %111 = vmatpush2.bf16.msra.mxu0 0
  %112 = vmatprep.subr.bf16.mxu0 0
  %113 = vmatpush2.bf16.msra.mxu0 0
  %114 = vmatprep.subr.bf16.mxu0 0
  %115 = vmatpush2.bf16.msra.mxu0 0
  %116 = vmatprep.subr.bf16.mxu0 0
  %117 = vmatpush2.bf16.msra.mxu0 0
  %118 = vmatprep.subr.bf16.mxu0 0
  %119 = vmatpush2.bf16.msra.mxu0 0
  %120 = vmatprep.mubr.bf16.mxu0 0
  %121 = vmatmul.mubr.bf16.gmra.mxu0 %v73
  %v122 = vpop.f32.mrf.mxu0
  %v123 = vadd.f32 %v38, %v122
  %v124 = vpop.f32.mrf.mxu0
  %v125 = vadd.f32 %v42, %v124
  %v126 = vpop.f32.mrf.mxu0
  %v127 = vpop.f32.mrf.mxu0
  %128 = vdwg.mxu0
  %129 = vmatprep.subr.bf16.mxu0 0
  %130 = vmatpush1.bf16.msra.mxu0 0
  %131 = vmatprep.subr.bf16.mxu0 0
  %132 = vmatpush1.bf16.msra.mxu0 0
  %133 = vmatprep.subr.bf16.mxu0 0
  %134 = vmatpush1.bf16.msra.mxu0 0
  %135 = vmatprep.subr.bf16.mxu0 0
  %136 = vmatpush1.bf16.msra.mxu0 0
  %137 = vmatprep.subr.bf16.mxu0 0
  %138 = vmatpush1.bf16.msra.mxu0 0
  %139 = vmatprep.subr.bf16.mxu0 0
  %140 = vmatpush1.bf16.msra.mxu0 0
  %141 = vmatprep.subr.bf16.mxu0 0
  %142 = vmatpush1.bf16.msra.mxu0 0
  %143 = vmatprep.subr.bf16.mxu0 %v86
  %144 = vmatpush1.bf16.msra.mxu0 %v83
  %145 = vmatprep.subr.bf16.mxu0 0
  %146 = vmatpush2.bf16.msra.mxu0 0
  %147 = vmatprep.subr.bf16.mxu0 0
  %148 = vmatpush2.bf16.msra.mxu0 0
  %149 = vmatprep.subr.bf16.mxu0 0
  %150 = vmatpush2.bf16.msra.mxu0 0
  %151 = vmatprep.subr.bf16.mxu0 0
  %152 = vmatpush2.bf16.msra.mxu0 0
  %153 = vmatprep.subr.bf16.mxu0 0
  %154 = vmatpush2.bf16.msra.mxu0 0
  %155 = vmatprep.subr.bf16.mxu0 0
  %156 = vmatpush2.bf16.msra.mxu0 0
  %157 = vmatprep.subr.bf16.mxu0 0
  %158 = vmatpush2.bf16.msra.mxu0 0
  %159 = vmatprep.subr.bf16.mxu0 0
  %160 = vmatpush2.bf16.msra.mxu0 0
  %161 = vmatprep.mubr.bf16.mxu0 0
  %162 = vmatmul.mubr.bf16.gmra.mxu0 %v73
  %v163 = vpop.f32.mrf.mxu0
  %v164 = vadd.f32 %v46, %v163
  %v165 = vpop.f32.mrf.mxu0
  %v166 = vadd.f32 %v50, %v165
  %v167 = vpop.f32.mrf.mxu0
  %v168 = vpop.f32.mrf.mxu0
  %169 = vdwg.mxu0
  %vm170 = vcmp.gt.f32.partialorder %v123, 0.0
  %vm171 = vcmp.gt.f32.partialorder %v125, 0.0
  %vm172 = vcmp.gt.f32.partialorder %v164, 0.0
  %vm173 = vcmp.gt.f32.partialorder %v166, 0.0
  %v174 = vmul.f32 %v123, 0.2
  %v175 = vmul.f32 %v125, 0.2
  %v176 = vmul.f32 %v164, 0.2
  %v177 = vmul.f32 %v166, 0.2
  %v178 = vsel %vm170, %v123, %v174
  %v179 = vsel %vm171, %v125, %v175
  %v180 = vsel %vm172, %v164, %v176
  %v181 = vsel %vm173, %v166, %v177
  %v182 = vpack.c.bf16 %v178, %v178
  %v183 = vpack.c.bf16 %v179, %v179
  %v184 = vpack.c.bf16 %v180, %v180
  %v185 = vpack.c.bf16 %v181, %v181
  %v186 = vld [vmem:[%s3] sm:$0xff]
  %v187 = vld [vmem:[%s3 + $0x8] sm:$0xff]
  %v188 = vld [vmem:[%s3 + $0x10] sm:$0xff]
  %v189 = vld [vmem:[%s3 + $0x18] sm:$0xff]
  %v190 = vld [vmem:[%s3 + $0x20] sm:$0xff]
  %v191 = vld [vmem:[%s3 + $0x28] sm:$0xff]
  %v192 = vld [vmem:[%s3 + $0x30] sm:$0xff]
  %v193 = vld [vmem:[%s3 + $0x38] sm:$0xff]
  %v194 = vld [vmem:[%s3 + $0x40] sm:$0xff]
  %v195 = vld [vmem:[%s3 + $0x48] sm:$0xff]
  %v196 = vld [vmem:[%s3 + $0x50] sm:$0xff]
  %v197 = vld [vmem:[%s3 + $0x58] sm:$0xff]
  %v198 = vld [vmem:[%s3 + $0x60] sm:$0xff]
  %v199 = vld [vmem:[%s3 + $0x68] sm:$0xff]
  %v200 = vld [vmem:[%s3 + $0x70] sm:$0xff]
  %v201 = vld [vmem:[%s3 + $0x78] sm:$0xff]
  %v202 = vld [vmem:[%s3 + $0x80] sm:$0xff]
  %v203 = vld [vmem:[%s3 + $0x88] sm:$0xff]
  %v204 = vld [vmem:[%s3 + $0x90] sm:$0xff]
  %v205 = vld [vmem:[%s3 + $0x98] sm:$0xff]
  %v206 = vld [vmem:[%s3 + $0xa0] sm:$0xff]
  %v207 = vld [vmem:[%s3 + $0xa8] sm:$0xff]
  %v208 = vld [vmem:[%s3 + $0xb0] sm:$0xff]
  %v209 = vld [vmem:[%s3 + $0xb8] sm:$0xff]
  %v210 = vld [vmem:[%s3 + $0xc0] sm:$0xff]
  %v211 = vld [vmem:[%s3 + $0xc8] sm:$0xff]
  %v212 = vld [vmem:[%s3 + $0xd0] sm:$0xff]
  %v213 = vld [vmem:[%s3 + $0xd8] sm:$0xff]
  %v214 = vld [vmem:[%s3 + $0xe0] sm:$0xff]
  %v215 = vld [vmem:[%s3 + $0xe8] sm:$0xff]
  %v216 = vld [vmem:[%s3 + $0xf0] sm:$0xff]
  %v217 = vld [vmem:[%s3 + $0xf8] sm:$0xff]
  %v218 = vld [vmem:[%s3 + $0x100] sm:$0xff]
  %v219 = vld [vmem:[%s3 + $0x108] sm:$0xff]
  %v220 = vld [vmem:[%s3 + $0x110] sm:$0xff]
  %v221 = vld [vmem:[%s3 + $0x118] sm:$0xff]
  %v222 = vld [vmem:[%s3 + $0x120] sm:$0xff]
  %v223 = vld [vmem:[%s3 + $0x128] sm:$0xff]
  %v224 = vld [vmem:[%s3 + $0x130] sm:$0xff]
  %v225 = vld [vmem:[%s3 + $0x138] sm:$0xff]
  %v226 = vld [vmem:[%s3 + $0x140] sm:$0xff]
  %v227 = vld [vmem:[%s3 + $0x148] sm:$0xff]
  %v228 = vld [vmem:[%s3 + $0x150] sm:$0xff]
  %v229 = vld [vmem:[%s3 + $0x158] sm:$0xff]
  %v230 = vld [vmem:[%s3 + $0x160] sm:$0xff]
  %v231 = vld [vmem:[%s3 + $0x168] sm:$0xff]
  %v232 = vld [vmem:[%s3 + $0x170] sm:$0xff]
  %v233 = vld [vmem:[%s3 + $0x178] sm:$0xff]
  %v234 = vld [vmem:[%s3 + $0x180] sm:$0xff]
  %v235 = vld [vmem:[%s3 + $0x188] sm:$0xff]
  %v236 = vld [vmem:[%s3 + $0x190] sm:$0xff]
  %v237 = vld [vmem:[%s3 + $0x198] sm:$0xff]
  %v238 = vld [vmem:[%s3 + $0x1a0] sm:$0xff]
  %v239 = vld [vmem:[%s3 + $0x1a8] sm:$0xff]
  %v240 = vld [vmem:[%s3 + $0x1b0] sm:$0xff]
  %v241 = vld [vmem:[%s3 + $0x1b8] sm:$0xff]
  %v242 = vld [vmem:[%s3 + $0x1c0] sm:$0xff]
  %v243 = vld [vmem:[%s3 + $0x1c8] sm:$0xff]
  %v244 = vld [vmem:[%s3 + $0x1d0] sm:$0xff]
  %v245 = vld [vmem:[%s3 + $0x1d8] sm:$0xff]
  %v246 = vld [vmem:[%s3 + $0x1e0] sm:$0xff]
  %v247 = vld [vmem:[%s3 + $0x1e8] sm:$0xff]
  %v248 = vld [vmem:[%s3 + $0x1f0] sm:$0xff]
  %v249 = vld [vmem:[%s3 + $0x1f8] sm:$0xff]
  %v250 = vld [vmem:[%s4] sm:$0x3]
  %v252 = vlaneseq
  %v253 = vshrl.u32 %v252, 7
  %v254 = vsub.s32 0, %v253
  %v255 = vrot.slane %v250, %v254
  %v256 = vlaneseq
  %v257 = vshrl.u32 %v256, 7
  %v258 = vsub.s32 1, %v257
  %v259 = vrot.slane %v250, %v258
  %v326 = vunpack.c.l.b16 %v186
  %v327 = vunpack.c.h.b16 %v186
  %v328 = vunpack.c.l.b16 %v187
  %v329 = vunpack.c.h.b16 %v187
  %v330 = vunpack.c.l.b16 %v188
  %v331 = vunpack.c.h.b16 %v188
  %v332 = vunpack.c.l.b16 %v189
  %v333 = vunpack.c.h.b16 %v189
  %v334 = vunpack.c.l.b16 %v190
  %v335 = vunpack.c.h.b16 %v190
  %v336 = vunpack.c.l.b16 %v191
  %v337 = vunpack.c.h.b16 %v191
  %v338 = vunpack.c.l.b16 %v192
  %v339 = vunpack.c.h.b16 %v192
  %v340 = vunpack.c.l.b16 %v193
  %v341 = vunpack.c.h.b16 %v193
  %v342 = vunpack.c.l.b16 %v194
  %v343 = vunpack.c.h.b16 %v194
  %v344 = vunpack.c.l.b16 %v195
  %v345 = vunpack.c.h.b16 %v195
  %v346 = vunpack.c.l.b16 %v196
  %v347 = vunpack.c.h.b16 %v196
  %v348 = vunpack.c.l.b16 %v197
  %v349 = vunpack.c.h.b16 %v197
  %v350 = vunpack.c.l.b16 %v198
  %v351 = vunpack.c.h.b16 %v198
  %v352 = vunpack.c.l.b16 %v199
  %v353 = vunpack.c.h.b16 %v199
  %v354 = vunpack.c.l.b16 %v200
  %v355 = vunpack.c.h.b16 %v200
  %v356 = vunpack.c.l.b16 %v201
  %v357 = vunpack.c.h.b16 %v201
  %v358 = vunpack.c.l.b16 %v202
  %v359 = vunpack.c.h.b16 %v202
  %v360 = vunpack.c.l.b16 %v203
  %v361 = vunpack.c.h.b16 %v203
  %v362 = vunpack.c.l.b16 %v204
  %v363 = vunpack.c.h.b16 %v204
  %v364 = vunpack.c.l.b16 %v205
  %v365 = vunpack.c.h.b16 %v205
  %v366 = vunpack.c.l.b16 %v206
  %v367 = vunpack.c.h.b16 %v206
  %v368 = vunpack.c.l.b16 %v207
  %v369 = vunpack.c.h.b16 %v207
  %v370 = vunpack.c.l.b16 %v208
  %v371 = vunpack.c.h.b16 %v208
  %v372 = vunpack.c.l.b16 %v209
  %v373 = vunpack.c.h.b16 %v209
  %v374 = vunpack.c.l.b16 %v210
  %v375 = vunpack.c.h.b16 %v210
  %v376 = vunpack.c.l.b16 %v211
  %v377 = vunpack.c.h.b16 %v211
  %v378 = vunpack.c.l.b16 %v212
  %v379 = vunpack.c.h.b16 %v212
  %v380 = vunpack.c.l.b16 %v213
  %v381 = vunpack.c.h.b16 %v213
  %v382 = vunpack.c.l.b16 %v214
  %v383 = vunpack.c.h.b16 %v214
  %v384 = vunpack.c.l.b16 %v215
  %v385 = vunpack.c.h.b16 %v215
  %v386 = vunpack.c.l.b16 %v216
  %v387 = vunpack.c.h.b16 %v216
  %v388 = vunpack.c.l.b16 %v217
  %v389 = vunpack.c.h.b16 %v217
  %v390 = vunpack.c.l.b16 %v218
  %v391 = vunpack.c.h.b16 %v218
  %v392 = vunpack.c.l.b16 %v219
  %v393 = vunpack.c.h.b16 %v219
  %v394 = vunpack.c.l.b16 %v220
  %v395 = vunpack.c.h.b16 %v220
  %v396 = vunpack.c.l.b16 %v221
  %v397 = vunpack.c.h.b16 %v221
  %v398 = vunpack.c.l.b16 %v222
  %v399 = vunpack.c.h.b16 %v222
  %v400 = vunpack.c.l.b16 %v223
  %v401 = vunpack.c.h.b16 %v223
  %v402 = vunpack.c.l.b16 %v224
  %v403 = vunpack.c.h.b16 %v224
  %v404 = vunpack.c.l.b16 %v225
  %v405 = vunpack.c.h.b16 %v225
  %v406 = vunpack.c.l.b16 %v226
  %v407 = vunpack.c.h.b16 %v226
  %v408 = vunpack.c.l.b16 %v227
  %v409 = vunpack.c.h.b16 %v227
  %v410 = vunpack.c.l.b16 %v228
  %v411 = vunpack.c.h.b16 %v228
  %v412 = vunpack.c.l.b16 %v229
  %v413 = vunpack.c.h.b16 %v229
  %v414 = vunpack.c.l.b16 %v230
  %v415 = vunpack.c.h.b16 %v230
  %v416 = vunpack.c.l.b16 %v231
  %v417 = vunpack.c.h.b16 %v231
  %v418 = vunpack.c.l.b16 %v232
  %v419 = vunpack.c.h.b16 %v232
  %v420 = vunpack.c.l.b16 %v233
  %v421 = vunpack.c.h.b16 %v233
  %v422 = vunpack.c.l.b16 %v234
  %v423 = vunpack.c.h.b16 %v234
  %v424 = vunpack.c.l.b16 %v235
  %v425 = vunpack.c.h.b16 %v235
  %v426 = vunpack.c.l.b16 %v236
  %v427 = vunpack.c.h.b16 %v236
  %v428 = vunpack.c.l.b16 %v237
  %v429 = vunpack.c.h.b16 %v237
  %v430 = vunpack.c.l.b16 %v238
  %v431 = vunpack.c.h.b16 %v238
  %v432 = vunpack.c.l.b16 %v239
  %v433 = vunpack.c.h.b16 %v239
  %v434 = vunpack.c.l.b16 %v240
  %v435 = vunpack.c.h.b16 %v240
  %v436 = vunpack.c.l.b16 %v241
  %v437 = vunpack.c.h.b16 %v241
  %v438 = vunpack.c.l.b16 %v242
  %v439 = vunpack.c.h.b16 %v242
  %v440 = vunpack.c.l.b16 %v243
  %v441 = vunpack.c.h.b16 %v243
  %v442 = vunpack.c.l.b16 %v244
  %v443 = vunpack.c.h.b16 %v244
  %v444 = vunpack.c.l.b16 %v245
  %v445 = vunpack.c.h.b16 %v245
  %v446 = vunpack.c.l.b16 %v246
  %v447 = vunpack.c.h.b16 %v246
  %v448 = vunpack.c.l.b16 %v247
  %v449 = vunpack.c.h.b16 %v247
  %v450 = vunpack.c.l.b16 %v248
  %v451 = vunpack.c.h.b16 %v248
  %v452 = vunpack.c.l.b16 %v249
  %v453 = vunpack.c.h.b16 %v249
  %v454 = vpack.c.b16 %v328, %v326
  %v455 = vpack.c.b16 %v329, %v327
  %v456 = vpack.c.b16 %v332, %v330
  %v457 = vpack.c.b16 %v333, %v331
  %v458 = vpack.c.b16 %v336, %v334
  %v459 = vpack.c.b16 %v337, %v335
  %v460 = vpack.c.b16 %v340, %v338
  %v461 = vpack.c.b16 %v341, %v339
  %v462 = vpack.c.b16 %v344, %v342
  %v463 = vpack.c.b16 %v345, %v343
  %v464 = vpack.c.b16 %v348, %v346
  %v465 = vpack.c.b16 %v349, %v347
  %v466 = vpack.c.b16 %v352, %v350
  %v467 = vpack.c.b16 %v353, %v351
  %v468 = vpack.c.b16 %v356, %v354
  %v469 = vpack.c.b16 %v357, %v355
  %v470 = vpack.c.b16 %v360, %v358
  %v471 = vpack.c.b16 %v361, %v359
  %v472 = vpack.c.b16 %v364, %v362
  %v473 = vpack.c.b16 %v365, %v363
  %v474 = vpack.c.b16 %v368, %v366
  %v475 = vpack.c.b16 %v369, %v367
  %v476 = vpack.c.b16 %v372, %v370
  %v477 = vpack.c.b16 %v373, %v371
  %v478 = vpack.c.b16 %v376, %v374
  %v479 = vpack.c.b16 %v377, %v375
  %v480 = vpack.c.b16 %v380, %v378
  %v481 = vpack.c.b16 %v381, %v379
  %v482 = vpack.c.b16 %v384, %v382
  %v483 = vpack.c.b16 %v385, %v383
  %v484 = vpack.c.b16 %v388, %v386
  %v485 = vpack.c.b16 %v389, %v387
  %v486 = vpack.c.b16 %v392, %v390
  %v487 = vpack.c.b16 %v393, %v391
  %v488 = vpack.c.b16 %v396, %v394
  %v489 = vpack.c.b16 %v397, %v395
  %v490 = vpack.c.b16 %v400, %v398
  %v491 = vpack.c.b16 %v401, %v399
  %v492 = vpack.c.b16 %v404, %v402
  %v493 = vpack.c.b16 %v405, %v403
  %v494 = vpack.c.b16 %v408, %v406
  %v495 = vpack.c.b16 %v409, %v407
  %v496 = vpack.c.b16 %v412, %v410
  %v497 = vpack.c.b16 %v413, %v411
  %v498 = vpack.c.b16 %v416, %v414
  %v499 = vpack.c.b16 %v417, %v415
  %v500 = vpack.c.b16 %v420, %v418
  %v501 = vpack.c.b16 %v421, %v419
  %v502 = vpack.c.b16 %v424, %v422
  %v503 = vpack.c.b16 %v425, %v423
  %v504 = vpack.c.b16 %v428, %v426
  %v505 = vpack.c.b16 %v429, %v427
  %v506 = vpack.c.b16 %v432, %v430
  %v507 = vpack.c.b16 %v433, %v431
  %v508 = vpack.c.b16 %v436, %v434
  %v509 = vpack.c.b16 %v437, %v435
  %v510 = vpack.c.b16 %v440, %v438
  %v511 = vpack.c.b16 %v441, %v439
  %v512 = vpack.c.b16 %v444, %v442
  %v513 = vpack.c.b16 %v445, %v443
  %v514 = vpack.c.b16 %v448, %v446
  %v515 = vpack.c.b16 %v449, %v447
  %v516 = vpack.c.b16 %v452, %v450
  %v517 = vpack.c.b16 %v453, %v451
  %582 = vmatprep.subr.bf16.mxu0 %v469
  %583 = vmatpush1.bf16.msra.mxu0 %v468
  %584 = vmatprep.subr.bf16.mxu0 %v467
  %585 = vmatpush1.bf16.msra.mxu0 %v466
  %586 = vmatprep.subr.bf16.mxu0 %v465
  %587 = vmatpush1.bf16.msra.mxu0 %v464
  %588 = vmatprep.subr.bf16.mxu0 %v463
  %589 = vmatpush1.bf16.msra.mxu0 %v462
  %590 = vmatprep.subr.bf16.mxu0 %v461
  %591 = vmatpush1.bf16.msra.mxu0 %v460
  %592 = vmatprep.subr.bf16.mxu0 %v459
  %593 = vmatpush1.bf16.msra.mxu0 %v458
  %594 = vmatprep.subr.bf16.mxu0 %v457
  %595 = vmatpush1.bf16.msra.mxu0 %v456
  %596 = vmatprep.subr.bf16.mxu0 %v455
  %597 = vmatpush1.bf16.msra.mxu0 %v454
  %598 = vmatprep.subr.bf16.mxu0 %v485
  %599 = vmatpush2.bf16.msra.mxu0 %v484
  %600 = vmatprep.subr.bf16.mxu0 %v483
  %601 = vmatpush2.bf16.msra.mxu0 %v482
  %602 = vmatprep.subr.bf16.mxu0 %v481
  %603 = vmatpush2.bf16.msra.mxu0 %v480
  %604 = vmatprep.subr.bf16.mxu0 %v479
  %605 = vmatpush2.bf16.msra.mxu0 %v478
  %606 = vmatprep.subr.bf16.mxu0 %v477
  %607 = vmatpush2.bf16.msra.mxu0 %v476
  %608 = vmatprep.subr.bf16.mxu0 %v475
  %609 = vmatpush2.bf16.msra.mxu0 %v474
  %610 = vmatprep.subr.bf16.mxu0 %v473
  %611 = vmatpush2.bf16.msra.mxu0 %v472
  %612 = vmatprep.subr.bf16.mxu0 %v471
  %613 = vmatpush2.bf16.msra.mxu0 %v470
  %614 = vmatprep.mubr.bf16.mxu0 %v183
  %615 = vmatmul.mubr.bf16.gmra.mxu0 %v182
  %v616 = vpop.f32.mrf.mxu0
  %v617 = vadd.f32 %v255, %v616
  %v618 = vpop.f32.mrf.mxu0
  %v619 = vadd.f32 %v259, %v618
  %v620 = vpop.f32.mrf.mxu0
  %v621 = vpop.f32.mrf.mxu0
  %622 = vdwg.mxu0
  %623 = vmatprep.subr.bf16.mxu0 %v501
  %624 = vmatpush1.bf16.msra.mxu0 %v500
  %625 = vmatprep.subr.bf16.mxu0 %v499
  %626 = vmatpush1.bf16.msra.mxu0 %v498
  %627 = vmatprep.subr.bf16.mxu0 %v497
  %628 = vmatpush1.bf16.msra.mxu0 %v496
  %629 = vmatprep.subr.bf16.mxu0 %v495
  %630 = vmatpush1.bf16.msra.mxu0 %v494
  %631 = vmatprep.subr.bf16.mxu0 %v493
  %632 = vmatpush1.bf16.msra.mxu0 %v492
  %633 = vmatprep.subr.bf16.mxu0 %v491
  %634 = vmatpush1.bf16.msra.mxu0 %v490
  %635 = vmatprep.subr.bf16.mxu0 %v489
  %636 = vmatpush1.bf16.msra.mxu0 %v488
  %637 = vmatprep.subr.bf16.mxu0 %v487
  %638 = vmatpush1.bf16.msra.mxu0 %v486
  %639 = vmatprep.subr.bf16.mxu0 %v517
  %640 = vmatpush2.bf16.msra.mxu0 %v516
  %641 = vmatprep.subr.bf16.mxu0 %v515
  %642 = vmatpush2.bf16.msra.mxu0 %v514
  %643 = vmatprep.subr.bf16.mxu0 %v513
  %644 = vmatpush2.bf16.msra.mxu0 %v512
  %645 = vmatprep.subr.bf16.mxu0 %v511
  %646 = vmatpush2.bf16.msra.mxu0 %v510
  %647 = vmatprep.subr.bf16.mxu0 %v509
  %648 = vmatpush2.bf16.msra.mxu0 %v508
  %649 = vmatprep.subr.bf16.mxu0 %v507
  %650 = vmatpush2.bf16.msra.mxu0 %v506
  %651 = vmatprep.subr.bf16.mxu0 %v505
  %652 = vmatpush2.bf16.msra.mxu0 %v504
  %653 = vmatprep.subr.bf16.mxu0 %v503
  %654 = vmatpush2.bf16.msra.mxu0 %v502
  %655 = vmatprep.mubr.bf16.mxu0 %v185
  %656 = vmatmul.mubr.bf16.gmra.mxu0 %v184
  %v657 = vpop.f32.mrf.mxu0
  %v658 = vadd.f32 %v617, %v657
  %v659 = vpop.f32.mrf.mxu0
  %v660 = vadd.f32 %v619, %v659
  %v661 = vpop.f32.mrf.mxu0
  %v662 = vpop.f32.mrf.mxu0
  %663 = vdwg.mxu0
  %vm664 = vcmp.gt.f32.partialorder %v658, 0.0
  %vm665 = vcmp.gt.f32.partialorder %v660, 0.0
  %v666 = vmul.f32 %v658, 0.2
  %v667 = vmul.f32 %v660, 0.2
  %v668 = vsel %vm664, %v658, %v666
  %v669 = vsel %vm665, %v660, %v667
  %v670 = vpack.c.bf16 %v668, %v668
  %v671 = vpack.c.bf16 %v669, %v669
  %v672 = vld [vmem:[%s5] sm:$0xf]
  %v673 = vld [vmem:[%s5 + $0x4] sm:$0xf]
  %v674 = vld [vmem:[%s5 + $0x8] sm:$0xf]
  %v675 = vld [vmem:[%s5 + $0xc] sm:$0xf]
  %v676 = vld [vmem:[%s5 + $0x10] sm:$0xf]
  %v677 = vld [vmem:[%s5 + $0x14] sm:$0xf]
  %v678 = vld [vmem:[%s5 + $0x18] sm:$0xf]
  %v679 = vld [vmem:[%s5 + $0x1c] sm:$0xf]
  %v680 = vld [vmem:[%s5 + $0x20] sm:$0xf]
  %v681 = vld [vmem:[%s5 + $0x24] sm:$0xf]
  %v682 = vld [vmem:[%s5 + $0x28] sm:$0xf]
  %v683 = vld [vmem:[%s5 + $0x2c] sm:$0xf]
  %v684 = vld [vmem:[%s5 + $0x30] sm:$0xf]
  %v685 = vld [vmem:[%s5 + $0x34] sm:$0xf]
  %v686 = vld [vmem:[%s5 + $0x38] sm:$0xf]
  %v687 = vld [vmem:[%s5 + $0x3c] sm:$0xf]
  %v688 = vld [vmem:[%s5 + $0x40] sm:$0xf]
  %v689 = vld [vmem:[%s5 + $0x44] sm:$0xf]
  %v690 = vld [vmem:[%s5 + $0x48] sm:$0xf]
  %v691 = vld [vmem:[%s5 + $0x4c] sm:$0xf]
  %v692 = vld [vmem:[%s5 + $0x50] sm:$0xf]
  %v693 = vld [vmem:[%s5 + $0x54] sm:$0xf]
  %v694 = vld [vmem:[%s5 + $0x58] sm:$0xf]
  %v695 = vld [vmem:[%s5 + $0x5c] sm:$0xf]
  %v696 = vld [vmem:[%s5 + $0x60] sm:$0xf]
  %v697 = vld [vmem:[%s5 + $0x64] sm:$0xf]
  %v698 = vld [vmem:[%s5 + $0x68] sm:$0xf]
  %v699 = vld [vmem:[%s5 + $0x6c] sm:$0xf]
  %v700 = vld [vmem:[%s5 + $0x70] sm:$0xf]
  %v701 = vld [vmem:[%s5 + $0x74] sm:$0xf]
  %v702 = vld [vmem:[%s5 + $0x78] sm:$0xf]
  %v703 = vld [vmem:[%s5 + $0x7c] sm:$0xf]
  %v736 = vunpack.c.l.b16 %v672
  %v737 = vunpack.c.l.b16 %v673
  %v738 = vunpack.c.l.b16 %v674
  %v739 = vunpack.c.l.b16 %v675
  %v740 = vunpack.c.l.b16 %v676
  %v741 = vunpack.c.l.b16 %v677
  %v742 = vunpack.c.l.b16 %v678
  %v743 = vunpack.c.l.b16 %v679
  %v744 = vunpack.c.l.b16 %v680
  %v745 = vunpack.c.l.b16 %v681
  %v746 = vunpack.c.l.b16 %v682
  %v747 = vunpack.c.l.b16 %v683
  %v748 = vunpack.c.l.b16 %v684
  %v749 = vunpack.c.l.b16 %v685
  %v750 = vunpack.c.l.b16 %v686
  %v751 = vunpack.c.l.b16 %v687
  %v752 = vunpack.c.l.b16 %v688
  %v753 = vunpack.c.l.b16 %v689
  %v754 = vunpack.c.l.b16 %v690
  %v755 = vunpack.c.l.b16 %v691
  %v756 = vunpack.c.l.b16 %v692
  %v757 = vunpack.c.l.b16 %v693
  %v758 = vunpack.c.l.b16 %v694
  %v759 = vunpack.c.l.b16 %v695
  %v760 = vunpack.c.l.b16 %v696
  %v761 = vunpack.c.l.b16 %v697
  %v762 = vunpack.c.l.b16 %v698
  %v763 = vunpack.c.l.b16 %v699
  %v764 = vunpack.c.l.b16 %v700
  %v765 = vunpack.c.l.b16 %v701
  %v766 = vunpack.c.l.b16 %v702
  %v767 = vunpack.c.l.b16 %v703
  %v768 = vpack.c.b16 %v737, %v736
  %v769 = vpack.c.b16 %v739, %v738
  %v770 = vpack.c.b16 %v741, %v740
  %v771 = vpack.c.b16 %v743, %v742
  %v772 = vpack.c.b16 %v745, %v744
  %v773 = vpack.c.b16 %v747, %v746
  %v774 = vpack.c.b16 %v749, %v748
  %v775 = vpack.c.b16 %v751, %v750
  %v776 = vpack.c.b16 %v753, %v752
  %v777 = vpack.c.b16 %v755, %v754
  %v778 = vpack.c.b16 %v757, %v756
  %v779 = vpack.c.b16 %v759, %v758
  %v780 = vpack.c.b16 %v761, %v760
  %v781 = vpack.c.b16 %v763, %v762
  %v782 = vpack.c.b16 %v765, %v764
  %v783 = vpack.c.b16 %v767, %v766
  %800 = vmatprep.subr.bf16.mxu0 0
  %801 = vmatpush1.bf16.msra.mxu0 %v775
  %802 = vmatprep.subr.bf16.mxu0 0
  %803 = vmatpush1.bf16.msra.mxu0 %v774
  %804 = vmatprep.subr.bf16.mxu0 0
  %805 = vmatpush1.bf16.msra.mxu0 %v773
  %806 = vmatprep.subr.bf16.mxu0 0
  %807 = vmatpush1.bf16.msra.mxu0 %v772
  %808 = vmatprep.subr.bf16.mxu0 0
  %809 = vmatpush1.bf16.msra.mxu0 %v771
  %810 = vmatprep.subr.bf16.mxu0 0
  %811 = vmatpush1.bf16.msra.mxu0 %v770
  %812 = vmatprep.subr.bf16.mxu0 0
  %813 = vmatpush1.bf16.msra.mxu0 %v769
  %814 = vmatprep.subr.bf16.mxu0 0
  %815 = vmatpush1.bf16.msra.mxu0 %v768
  %816 = vmatprep.subr.bf16.mxu0 0
  %817 = vmatpush2.bf16.msra.mxu0 %v783
  %818 = vmatprep.subr.bf16.mxu0 0
  %819 = vmatpush2.bf16.msra.mxu0 %v782
  %820 = vmatprep.subr.bf16.mxu0 0
  %821 = vmatpush2.bf16.msra.mxu0 %v781
  %822 = vmatprep.subr.bf16.mxu0 0
  %823 = vmatpush2.bf16.msra.mxu0 %v780
  %824 = vmatprep.subr.bf16.mxu0 0
  %825 = vmatpush2.bf16.msra.mxu0 %v779
  %826 = vmatprep.subr.bf16.mxu0 0
  %827 = vmatpush2.bf16.msra.mxu0 %v778
  %828 = vmatprep.subr.bf16.mxu0 0
  %829 = vmatpush2.bf16.msra.mxu0 %v777
  %830 = vmatprep.subr.bf16.mxu0 0
  %831 = vmatpush2.bf16.msra.mxu0 %v776
  %832 = vmatprep.mubr.bf16.mxu0 %v671
  %833 = vmatmul.mubr.bf16.gmra.mxu0 %v670
  %v834 = vpop.f32.mrf.mxu0
  %v835 = vadd.f32 0.0, %v834
  %v836 = vpop.f32.mrf.mxu0
  %v837 = vpop.f32.mrf.mxu0
  %v838 = vpop.f32.mrf.mxu0
  %839 = vdwg.mxu0
  %v840 = vld [vmem:[%s6] sm:$0x1]
  %v842 = vlaneseq
  %v843 = vshrl.u32 %v842, 7
  %v844 = vsub.s32 0, %v843
  %v845 = vrot.slane %v840, %v844
  %v847 = vadd.f32 %v835, %v845
  %v848 = vxor.u32 %v847, 2147483648
  %v849 = vmul.f32 %v848, 1.442695
  %v850 = vpow.pop %v849
  %v851 = vadd.f32 %v850, 1.0
  %v852 = vrcp.pop %v851
  %v853 = vmul.f32 1.0, %v852
  %vm854 = vcmask 7168
  %855 = vst.msk [vmem:[%s7] sm:$0xff] %vm854, %v853
  // Predicated region
  $region30: #{discriminator_forward.1} parent=0 // pred_check
    _
  $region31: #{discriminator_forward.1} parent=0 // pred_check_branch
    %857 = sbr.rel (0) target = $region33
  $region32: #{discriminator_forward.1} parent=0 // pred_region
    _
  $region33: #{discriminator_forward.1} parent=0 // pred_fallthru
    _
  // Predicated region
  $region34: #{discriminator_forward.1} parent=0 // pred_check
    _
  $region35: #{discriminator_forward.1} parent=0 // pred_check_branch
    %859 = sbr.rel (0) target = $region37
  $region36: #{discriminator_forward.1} parent=0 // pred_region
    _
  $region37: #{discriminator_forward.1} parent=0 // pred_fallthru
    _

</llo_original>
